<compile_context>
chip_gen: v7x
topology: tpu7x:2x2x1
jax: 0.10.0
libtpu: 0.0.40
codegen_flags: <defaults>
</compile_context>

<pallas_src>
import jax
import jax.numpy as jnp
from jax.experimental import pallas as pl
from jax.experimental.pallas import tpu as pltpu

EPS = 1e-5


def _cdiv(a, b):
    return (a + b - 1) // b


def _round_up(x, n):
    return _cdiv(x, n) * n


# -----------------------------------------------------------------------------
# Kernel 1: partial BN statistics of the (bias-free) transposed-conv output.
#   x_ref:   (1, Cin, TILE)      w_ref: (4*Cout, Cin)      out_ref: (1, 1, 4*Cout, 2)
# -----------------------------------------------------------------------------
def _stats_kernel(x_ref, w_ref, out_ref):
    y = jnp.dot(w_ref[...], x_ref[0], preferred_element_type=jnp.float32)  # (4Cout, TILE)
    s = jnp.sum(y, axis=1, keepdims=True)        # (4*Cout, 1)  per tap-row sum
    s2 = jnp.sum(y * y, axis=1, keepdims=True)   # (4*Cout, 1)  per tap-row sum of squares
    out_ref[0, 0] = jnp.concatenate([s, s2], axis=-1)


# -----------------------------------------------------------------------------
# Kernel 2: recompute the cheap matmul and apply BN scale/shift + ReLU.
#   x_ref: (1, Cin, TILE)   scale/shift: (4*Cout, 1)   out_ref: (1, 4*Cout, TILE)
# -----------------------------------------------------------------------------
def _apply_kernel(x_ref, w_ref, scale_ref, shift_ref, out_ref):
    y = jnp.dot(w_ref[...], x_ref[0], preferred_element_type=jnp.float32)
    out_ref[0] = jnp.maximum(y * scale_ref[...] + shift_ref[...], 0.0)


def aux_up_block_pallas(x_nchw, weight, bias, gamma, beta, *, tile_hw=32768):
    """x_nchw: (B, Cin, H, W); weight: (Cin, Cout, 2, 2) (PyTorch ConvTranspose2d layout);
    bias/gamma/beta: (Cout,).  Returns (B, Cout, 2H, 2W) float32 (NCHW, like PyTorch)."""
    # bias accepted for API parity but unused: training-mode BN cancels it exactly.
    del bias
    B, Cin, H, W = x_nchw.shape
    Cout = weight.shape[1]
    C4 = 4 * Cout
    HW = H * W

    # free view (no transpose copy): NCHW -> (B, Cin, H*W)
    x3 = x_nchw.reshape(B, Cin, HW).astype(jnp.float32)

    # Pixel-axis tiling: as few, as large lane-dense tiles as possible (target
    # tile_hw columns), sized to keep padding waste minimal.  Zero-padded columns
    # contribute exactly 0 to the BN sums (no conv bias), so stats stay exact.
    n_tiles = max(1, _cdiv(HW, tile_hw))
    tile = _round_up(_cdiv(HW, n_tiles), 128)
    hw_pad = tile * n_tiles
    if hw_pad != HW:
        x3 = jnp.pad(x3, ((0, 0), (0, 0), (0, hw_pad - HW)))

    # (Cin, Cout, kH, kW) -> (4*Cout, Cin), row = (ki*2 + kj)*Cout + co
    w = jnp.transpose(weight, (2, 3, 1, 0)).reshape(C4, Cin).astype(jnp.float32)

    cparams = pltpu.CompilerParams(
        # All grid steps are independent (partial outputs / pure apply), so both axes
        # are parallel -> v7x megacore uses both TensorCores; no-op on v5e/v6e.
        dimension_semantics=("parallel", "parallel"),
        # Per-step VMEM ~192*tile bytes (~6 MiB at tile=32768); raise the scoped limit
        # for headroom on every generation (64 MiB <= physical VMEM on v5e/v6e/v7x).
        vmem_limit_bytes=64 * 1024 * 1024,
    )

    # ---- pass 1: per-(batch, tile) partial per-tap-row sums / sums of squares -----
    partials = pl.pallas_call(
        _stats_kernel,
        out_shape=jax.ShapeDtypeStruct((B, n_tiles, C4, 2), jnp.float32),
        grid_spec=pltpu.PrefetchScalarGridSpec(
            num_scalar_prefetch=0,
            grid=(B, n_tiles),
            in_specs=[
                pl.BlockSpec((1, Cin, tile), lambda b, t: (b, 0, t)),
                pl.BlockSpec((C4, Cin), lambda b, t: (0, 0)),
            ],
            out_specs=pl.BlockSpec((1, 1, C4, 2), lambda b, t: (b, t, 0, 0)),
        ),
        compiler_params=cparams,
    )(x3, w)

    # ---- tiny XLA combine: fold the 4 taps, BN mean/var -> scale & shift ----------
    inv_n = 1.0 / float(4 * B * HW)                   # BN sample count per channel = B*2H*2W
    tot = jnp.sum(partials, axis=(0, 1))              # (4*Cout, 2)
    tot = tot.reshape(4, Cout, 2).sum(axis=0)         # (Cout, 2) fold taps into channels
    mean = tot[:, 0] * inv_n
    var = tot[:, 1] * inv_n - mean * mean             # biased variance (BN training mode)
    scale_c = gamma.astype(jnp.float32) * jax.lax.rsqrt(var + EPS)
    shift_c = beta.astype(jnp.float32) - mean * scale_c
    scale = jnp.tile(scale_c, 4).reshape(C4, 1)       # broadcast per tap-row
    shift = jnp.tile(shift_c, 4).reshape(C4, 1)

    # ---- pass 2: matmul + scale/shift + ReLU, fully parallel grid ------------------
    out3 = pl.pallas_call(
        _apply_kernel,
        out_shape=jax.ShapeDtypeStruct((B, C4, hw_pad), jnp.float32),
        grid_spec=pltpu.PrefetchScalarGridSpec(
            num_scalar_prefetch=0,
            grid=(B, n_tiles),
            in_specs=[
                pl.BlockSpec((1, Cin, tile), lambda b, t: (b, 0, t)),
                pl.BlockSpec((C4, Cin), lambda b, t: (0, 0)),
                pl.BlockSpec((C4, 1), lambda b, t: (0, 0)),
                pl.BlockSpec((C4, 1), lambda b, t: (0, 0)),
            ],
            out_specs=pl.BlockSpec((1, C4, tile), lambda b, t: (b, 0, t)),
        ),
        compiler_params=cparams,
    )(x3, w, scale, shift)

    # TODO(synk): this tap->NCHW interleave is still an XLA transpose (full extra
    # read+write of the output); see header note for what in-kernel fusion would need.
    out = out3[:, :, :HW].reshape(B, 2, 2, Cout, H, W)   # (b, ki, kj, co, i, j)
    out = jnp.transpose(out, (0, 3, 4, 1, 5, 2))         # (b, co, i, ki, j, kj)
    return out.reshape(B, Cout, 2 * H, 2 * W)


def aux_up_block_reference(x_nchw, weight, bias, gamma, beta):
    """Plain-JAX reference mirroring the PyTorch forward (training-mode BN)."""
    B, Cin, H, W = x_nchw.shape
    Cout = weight.shape[1]
    t = jnp.einsum('bcij,cokl->boikjl', x_nchw, weight)          # (B,Cout,H,2,W,2)
    y = t.reshape(B, Cout, 2 * H, 2 * W) + bias[None, :, None, None]
    mean = jnp.mean(y, axis=(0, 2, 3))
    var = jnp.var(y, axis=(0, 2, 3))                             # biased
    yn = (y - mean[None, :, None, None]) * jax.lax.rsqrt(var + EPS)[None, :, None, None]
    out = gamma[None, :, None, None] * yn + beta[None, :, None, None]
    return jnp.maximum(out, 0.0)


if __name__ == "__main__":
    # small shapes consistent with the module: in_channels=8 -> out_channels=4
    B, Cin, H, W = 2, 8, 16, 16
    Cout = Cin // 2

    key = jax.random.PRNGKey(0)
    kx, kw, kb, kg, kbeta = jax.random.split(key, 5)
    x = jax.random.normal(kx, (B, Cin, H, W), dtype=jnp.float32)
    # ConvTranspose2d weight layout: (in_channels, out_channels, kH, kW)
    weight = 0.2 * jax.random.normal(kw, (Cin, Cout, 2, 2), dtype=jnp.float32)
    bias = 0.1 * jax.random.normal(kb, (Cout,), dtype=jnp.float32)
    gamma = 1.0 + 0.05 * jax.random.normal(kg, (Cout,), dtype=jnp.float32)
    beta = 0.05 * jax.random.normal(kbeta, (Cout,), dtype=jnp.float32)

    out = jax.block_until_ready(
        jax.jit(aux_up_block_pallas)(x, weight, bias, gamma, beta)
    )
    ref = jax.block_until_ready(
        jax.jit(aux_up_block_reference)(x, weight, bias, gamma, beta)
    )

    assert out.shape == (B, Cout, 2 * H, 2 * W), out.shape
    err = float(jnp.max(jnp.abs(out - ref)))
    assert jnp.allclose(out, ref, rtol=1e-4, atol=1e-4), err
    print("KERNEL_OK")
</pallas_src>

<mosaic_0001>
module attributes {stable_mosaic.version = 11 : i64} {
  func.func @_stats_kernel(%arg0: i32, %arg1: i32, %arg2: memref<1x8x256xf32, #tpu.memory_space<vmem>>, %arg3: memref<16x8xf32, #tpu.memory_space<vmem>>, %arg4: memref<1x1x16x2xf32, #tpu.memory_space<vmem>>) attributes {dimension_semantics = [#tpu.dimension_semantics<parallel>, #tpu.dimension_semantics<parallel>], iteration_bounds = array<i64: 2, 1>, scalar_prefetch = 0 : i64, scratch_operands = 0 : i64, tpu.core_type = #tpu.core_type<tc>, window_params = [{transform_indices = @transform_0, window_bounds = array<i64: 1, 8, 256>}, {pipeline_mode = #tpu.pipeline_mode<synchronous>, transform_indices = @transform_1, window_bounds = array<i64: 16, 8>}, {transform_indices = @transform_2, window_bounds = array<i64: 1, 1, 16, 2>}]} {
    %c0 = arith.constant 0 : index
    %c0_0 = arith.constant 0 : index
    %0 = vector.load %arg3[%c0, %c0_0] : memref<16x8xf32, #tpu.memory_space<vmem>>, vector<16x8xf32>
    %c0_1 = arith.constant 0 : index
    %c0_2 = arith.constant 0 : index
    %c0_3 = arith.constant 0 : index
    %1 = vector.load %arg2[%c0_1, %c0_2, %c0_3] : memref<1x8x256xf32, #tpu.memory_space<vmem>>, vector<1x8x256xf32>
    %2 = vector.shape_cast %1 : vector<1x8x256xf32> to vector<8x256xf32>
    %cst = arith.constant dense<0.000000e+00> : vector<16x256xf32>
    %3 = tpu.matmul %0, %2, %cst {dimension_numbers = #tpu.dot_dimension_numbers<[1], [0], [0], [1], [0, 0, 1, 1], [], []>} : vector<16x8xf32>, vector<8x256xf32>, vector<16x256xf32> -> vector<16x256xf32>
    %cst_4 = arith.constant dense<0.000000e+00> : vector<16xf32>
    %4 = vector.multi_reduction <add>, %3, %cst_4 [1] : vector<16x256xf32> to vector<16xf32>
    %5 = vector.shape_cast %4 : vector<16xf32> to vector<16x1xf32>
    %6 = arith.mulf %3, %3 : vector<16x256xf32>
    %cst_5 = arith.constant dense<0.000000e+00> : vector<16xf32>
    %7 = vector.multi_reduction <add>, %6, %cst_5 [1] : vector<16x256xf32> to vector<16xf32>
    %8 = vector.shape_cast %7 : vector<16xf32> to vector<16x1xf32>
    %9 = tpu.concatenate %5, %8 in 1 : vector<16x1xf32>, vector<16x1xf32> -> vector<16x2xf32>
    %c0_6 = arith.constant 0 : index
    %c0_7 = arith.constant 0 : index
    %c0_8 = arith.constant 0 : index
    %c0_9 = arith.constant 0 : index
    %10 = vector.load %arg4[%c0_6, %c0_7, %c0_8, %c0_9] : memref<1x1x16x2xf32, #tpu.memory_space<vmem>>, vector<1x1x16x2xf32>
    %11 = vector.shape_cast %10 : vector<1x1x16x2xf32> to vector<16x2xf32>
    %12 = vector.shape_cast %9 : vector<16x2xf32> to vector<1x1x16x2xf32>
    tpu.vector_store %arg4[%c0_6, %c0_7, %c0_8, %c0_9], %12 {strides = array<i32>} : memref<1x1x16x2xf32, #tpu.memory_space<vmem>>, vector<1x1x16x2xf32>,
    return
  }
  func.func @transform_0(%arg0: i32, %arg1: i32) -> (i32, i32, i32) {
    %c0_i32 = arith.constant 0 : i32
    %c0_i32_0 = arith.constant 0 : i32
    return %arg0, %c0_i32, %arg1 : i32, i32, i32
  }
  func.func @transform_1(%arg0: i32, %arg1: i32) -> (i32, i32) {
    %c0_i32 = arith.constant 0 : i32
    %c0_i32_0 = arith.constant 0 : i32
    %c0_i32_1 = arith.constant 0 : i32
    return %c0_i32, %c0_i32_0 : i32, i32
  }
  func.func @transform_2(%arg0: i32, %arg1: i32) -> (i32, i32, i32, i32) {
    %c0_i32 = arith.constant 0 : i32
    %c0_i32_0 = arith.constant 0 : i32
    %c0_i32_1 = arith.constant 0 : i32
    return %arg0, %arg1, %c0_i32, %c0_i32_0 : i32, i32, i32, i32
  }
}

module attributes {stable_mosaic.version = 11 : i64} {
  func.func @_apply_kernel(%arg0: i32, %arg1: i32, %arg2: memref<1x8x256xf32, #tpu.memory_space<vmem>>, %arg3: memref<16x8xf32, #tpu.memory_space<vmem>>, %arg4: memref<16x1xf32, #tpu.memory_space<vmem>>, %arg5: memref<16x1xf32, #tpu.memory_space<vmem>>, %arg6: memref<1x16x256xf32, #tpu.memory_space<vmem>>) attributes {dimension_semantics = [#tpu.dimension_semantics<parallel>, #tpu.dimension_semantics<parallel>], iteration_bounds = array<i64: 2, 1>, scalar_prefetch = 0 : i64, scratch_operands = 0 : i64, tpu.core_type = #tpu.core_type<tc>, window_params = [{transform_indices = @transform_0, window_bounds = array<i64: 1, 8, 256>}, {pipeline_mode = #tpu.pipeline_mode<synchronous>, transform_indices = @transform_1, window_bounds = array<i64: 16, 8>}, {pipeline_mode = #tpu.pipeline_mode<synchronous>, transform_indices = @transform_2, window_bounds = array<i64: 16, 1>}, {pipeline_mode = #tpu.pipeline_mode<synchronous>, transform_indices = @transform_3, window_bounds = array<i64: 16, 1>}, {transform_indices = @transform_4, window_bounds = array<i64: 1, 16, 256>}]} {
    %c0 = arith.constant 0 : index
    %c0_0 = arith.constant 0 : index
    %0 = vector.load %arg3[%c0, %c0_0] : memref<16x8xf32, #tpu.memory_space<vmem>>, vector<16x8xf32>
    %c0_1 = arith.constant 0 : index
    %c0_2 = arith.constant 0 : index
    %c0_3 = arith.constant 0 : index
    %1 = vector.load %arg2[%c0_1, %c0_2, %c0_3] : memref<1x8x256xf32, #tpu.memory_space<vmem>>, vector<1x8x256xf32>
    %2 = vector.shape_cast %1 : vector<1x8x256xf32> to vector<8x256xf32>
    %cst = arith.constant dense<0.000000e+00> : vector<16x256xf32>
    %3 = tpu.matmul %0, %2, %cst {dimension_numbers = #tpu.dot_dimension_numbers<[1], [0], [0], [1], [0, 0, 1, 1], [], []>} : vector<16x8xf32>, vector<8x256xf32>, vector<16x256xf32> -> vector<16x256xf32>
    %c0_4 = arith.constant 0 : index
    %c0_5 = arith.constant 0 : index
    %4 = vector.load %arg4[%c0_4, %c0_5] : memref<16x1xf32, #tpu.memory_space<vmem>>, vector<16x1xf32>
    %5 = vector.broadcast %4 : vector<16x1xf32> to vector<16x256xf32>
    %6 = arith.mulf %3, %5 : vector<16x256xf32>
    %c0_6 = arith.constant 0 : index
    %c0_7 = arith.constant 0 : index
    %7 = vector.load %arg5[%c0_6, %c0_7] : memref<16x1xf32, #tpu.memory_space<vmem>>, vector<16x1xf32>
    %8 = vector.broadcast %7 : vector<16x1xf32> to vector<16x256xf32>
    %9 = arith.addf %6, %8 : vector<16x256xf32>
    %cst_8 = arith.constant 0.000000e+00 : f32
    %10 = vector.broadcast %cst_8 : f32 to vector<16x256xf32>
    %11 = arith.maximumf %9, %10 : vector<16x256xf32>
    %c0_9 = arith.constant 0 : index
    %c0_10 = arith.constant 0 : index
    %c0_11 = arith.constant 0 : index
    %12 = vector.load %arg6[%c0_9, %c0_10, %c0_11] : memref<1x16x256xf32, #tpu.memory_space<vmem>>, vector<1x16x256xf32>
    %13 = vector.shape_cast %12 : vector<1x16x256xf32> to vector<16x256xf32>
    %14 = vector.shape_cast %11 : vector<16x256xf32> to vector<1x16x256xf32>
    tpu.vector_store %arg6[%c0_9, %c0_10, %c0_11], %14 {strides = array<i32>} : memref<1x16x256xf32, #tpu.memory_space<vmem>>, vector<1x16x256xf32>,
    return
  }
  func.func @transform_0(%arg0: i32, %arg1: i32) -> (i32, i32, i32) {
    %c0_i32 = arith.constant 0 : i32
    %c0_i32_0 = arith.constant 0 : i32
    return %arg0, %c0_i32, %arg1 : i32, i32, i32
  }
  func.func @transform_1(%arg0: i32, %arg1: i32) -> (i32, i32) {
    %c0_i32 = arith.constant 0 : i32
    %c0_i32_0 = arith.constant 0 : i32
    %c0_i32_1 = arith.constant 0 : i32
    return %c0_i32, %c0_i32_0 : i32, i32
  }
  func.func @transform_2(%arg0: i32, %arg1: i32) -> (i32, i32) {
    %c0_i32 = arith.constant 0 : i32
    %c0_i32_0 = arith.constant 0 : i32
    %c0_i32_1 = arith.constant 0 : i32
    return %c0_i32, %c0_i32_0 : i32, i32
  }
  func.func @transform_3(%arg0: i32, %arg1: i32) -> (i32, i32) {
    %c0_i32 = arith.constant 0 : i32
    %c0_i32_0 = arith.constant 0 : i32
    %c0_i32_1 = arith.constant 0 : i32
    return %c0_i32, %c0_i32_0 : i32, i32
  }
  func.func @transform_4(%arg0: i32, %arg1: i32) -> (i32, i32, i32) {
    %c0_i32 = arith.constant 0 : i32
    %c0_i32_0 = arith.constant 0 : i32
    return %arg0, %c0_i32, %arg1 : i32, i32, i32
  }
}

</mosaic_0001>

<llo_original>
// kernel: tile.0
$region0: #{tile.0}
  %s0 = inlined_call_operand.vmem [shape: f32[4,4], index: 0, kind: input, shape index: {}]
  %s1 = inlined_call_operand.hbm [shape: f32[16,1], index: 1, kind: output, shape index: {}]
  $region1: #{tile.0} parent=0
    #allocation0 [shape = 'u8[8192]{0}', space=vmem, size = 0x2000, scoped, tag = 'operand span for operand 1']
    #allocation1 [shape = 's32[1]{0}', space=sflag, size = 0x4, scoped, tag = 'scoped memory for tile.0']
    #allocation2 [shape = 'u8[4096]{0}', space=vmem, size = 0x1000, scoped, tag = 'scoped mem for input reshape']
    %2 = vsyncpa [#allocation1], 0
    %s4 = sshllo.u32 0, 4
    %v5 = vld [vmem:[%s0] sm:%s4]
    %6 = vst [vmem:[#allocation2] sm:%s4] %v5
    %v7 = vld [vmem:[#allocation2] sm:$0xf]
    %vm8 = vcmask 7168
    %9 = vst.msk [vmem:[#allocation0] ss:$4 sm:$0xf] %vm8, %v7
    %v10 = vld [vmem:[#allocation2] sm:$0xf]
    %11 = vrot.lane.b32.xlu0 %v10, 127
    %v12 = vpop.permute.xlu0 %11
    %vm13 = vcmask 7168
    %s14 = scalar_lea.vmem [#allocation0], 1
    %15 = vst.msk [vmem:[%s14] ss:$4 sm:$0xf] %vm13, %v12
    %v16 = vld [vmem:[#allocation2] sm:$0xf]
    %17 = vrot.lane.b32.xlu0 %v16, 126
    %v18 = vpop.permute.xlu0 %17
    %vm19 = vcmask 7168
    %s20 = scalar_lea.vmem [#allocation0], 2
    %21 = vst.msk [vmem:[%s20] ss:$4 sm:$0xf] %vm19, %v18
    %v22 = vld [vmem:[#allocation2] sm:$0xf]
    %23 = vrot.lane.b32.xlu0 %v22, 125
    %v24 = vpop.permute.xlu0 %23
    %vm25 = vcmask 7168
    %s26 = scalar_lea.vmem [#allocation0], 3
    %27 = vst.msk [vmem:[%s26] ss:$4 sm:$0xf] %vm25, %v24
    %s29 = ssub.s32 256, 256
    %30 = vsyncadd [#allocation1], %s29
    %s32 = sshll.u32 [#allocation0], 4
    %s33 = int_to_ptr.vmem [resolvable:$true] %s32
    %35 = dma.vmem_to_hbm [thread:$0]  %s33, 256, %s1, [#allocation1]
    %36 = dma.done [#allocation1], 256
    %37 = vsyncpa [#allocation1], 1

// kernel: tile.18
$region0: #{tile.18}
  #allocation0 [shape = 's32[1]{0}', space=sflag, size = 0x4, scoped, tag = 'scoped memory for tile.18']
  %s0 = inlined_call_operand.vmem [shape: f32[4], index: 0, kind: input, shape index: {}]
  %s1 = inlined_call_operand.vmem [shape: f32[4,4], index: 1, kind: output, shape index: {}]
  // Predicated region
  $region2: #{tile.18} parent=0 // pred_check
    _
  $region3: #{tile.18} parent=0 // pred_check_branch
    %3 = sbr.rel (0) target = $region5
  $region4: #{tile.18} parent=0 // pred_region
    _
  $region5: #{tile.18} parent=0 // pred_fallthru
    _
  %v4 = vld [vmem:[%s0] ss:$0 sm:$0xff]
  %5 = vst [vmem:[%s1] sm:$0xf] %v4

// kernel: aux_up_block_pallas.2
$region0: #{aux_up_block_pallas.2}
  #allocation0 [shape = 'u32[]', space=smem, size = 0x4, offset = 0x4, fixed_abs, tag = 'smem constant byte address 0x4 - core index']
  #allocation1 [shape = 'u32[144,128]{1,0:T(1,128)}', space=vmem, size = 0x12000, scoped, tag = 'internal scratch']
  %s0 = inlined_call_operand.hbm [shape: f32[2,8,256], index: 0, kind: input, shape index: {}]
  %s1 = inlined_call_operand.hbm [shape: f32[16,8], index: 1, kind: input, shape index: {}]
  %s2 = inlined_call_operand.hbm [shape: f32[2,1,16,2], index: 2, kind: output, shape index: {}]
  %s3 = sld [smem:[#allocation0]]
  $region49: #{aux_up_block_pallas.2} parent=0
    _
  %s5 = ssub.s32 1, %s3
  %s6 = scalar_select 0, %s5, %s3
  $region1: #{aux_up_block_pallas.2} parent=0
    #allocation2 [shape = 'u8[16384]{0}', space=vmem, size = 0x4000, scoped, tag = 'input window, operand 0']
    #allocation3 [shape = 's32[2]{0}', space=sflag, size = 0x8, scoped, tag = 'scoped memory for aux_up_block_pallas.2']
    #allocation4 [shape = 's32[2]{0}', space=sflag, size = 0x8, scoped, tag = 'scoped memory for aux_up_block_pallas.2']
    #allocation5 [shape = 'u8[8192]{0}', space=vmem, size = 0x2000, scoped, tag = 'input window, operand 1, single buffered']
    #allocation6 [shape = 's32[1]{0}', space=sflag, size = 0x4, scoped, tag = 'scoped memory for aux_up_block_pallas.2']
    #allocation7 [shape = 'u8[16384]{0}', space=vmem, size = 0x4000, scoped, tag = 'output window, operand 0']
    %7 = vsyncpa [#allocation3], 0
    %s8 = scalar_lea.sflag [#allocation3], 1
    %9 = vsyncpa %s8, 0
    %10 = vsyncpa [#allocation6], 0
    %11 = vsyncpa [#allocation4], 0
    %s12 = scalar_lea.sflag [#allocation4], 1
    %13 = vsyncpa %s12, 0
    loop: start=0, step=1, limit=4
    $region2: #{aux_up_block_pallas.2} parent=1 // loop_pre_header
      _
    $region3: #{aux_up_block_pallas.2} parent=1 // loop_header
      %s15 = sphi 0, %s19
      %p16 = scmp.ge.s32.totalorder %s15, 4
      %s22 = sphi 0, %s34
      %s23 = sphi 0, %s30
      %s24 = sphi 0, %s22
      %s25 = sphi 0, %s23
      %s26 = sphi 0, %s24
      %s27 = sphi 0, %s25
      %s39 = sphi 0, %s41
      %s42 = sphi 0, %s39
      %s43 = sphi 0, %s42
      %s59 = sphi 0, %s43
      %s63 = sphi 0, %s63
      %s65 = sphi 0, %s63
      %s66 = sphi 0, %s65
      %s80 = sphi 0, %s66
      %s88 = sphi 0, %s90
      %s91 = sphi 0, %s88
      %s92 = sphi 0, %s91
      %s108 = sphi 0, %s92
    $region4: #{aux_up_block_pallas.2} parent=1 // loop_header_branch
      %18 = sbr.rel (%p16) target = $region8
    $region5: #{aux_up_block_pallas.2} parent=1 // loop_body
      %s20 = ssub.s32 %s15, 1
      %s21 = ssub.s32 %s15, 2
      %s28 = sadd.s32 1, %s23
      %p29 = scmp.ge.s32.totalorder %s28, 1
      %s30 = scalar_select %p29, 0, %s28
      %s31 = sadd.s32 1, %s22
      %s32 = scalar_select %p29, %s31, %s22
      %p33 = scmp.ge.s32.totalorder %s32, 2
      %s34 = scalar_select %p33, 0, %s32
      %s35 = ssub.s32 %s22, %s34
      %s36 = ssub.s32 %s23, %s30
      %s37 = sor.u32 %s35, %s36
      %p38 = scmp.eq.s32.totalorder %s37, 0
      %s40 = sadd.s32 %s39, 1
      %s41 = scalar_select %p38, %s39, %s40
      %p44 = pneg %p38
      %p45 = scmp.eq.s32.totalorder %s15, 1
      %p46 = por %p44, %p45
      %p47 = scmp.ne.s32.totalorder %s39, %s42
      %p48 = scmp.eq.s32.totalorder %s15, 0
      %p49 = por %p47, %p48
      %p50 = scmp.ne.s32.totalorder %s39, %s42
      %p51 = scmp.eq.s32.totalorder %s20, 1
      %p52 = por %p50, %p51
      %p53 = scmp.ne.s32.totalorder %s42, %s43
      %p54 = scmp.eq.s32.totalorder %s20, 0
      %p55 = por %p53, %p54
      %p56 = scmp.ne.s32.totalorder %s42, %s43
      %p57 = scmp.eq.s32.totalorder %s21, 1
      %p58 = por %p56, %p57
      %p60 = scmp.ne.s32.totalorder %s43, %s59
      %p61 = scmp.eq.s32.totalorder %s21, 0
      %p62 = por %p60, %p61
      %s64 = sadd.s32 %s63, 1
      %p67 = scmp.eq.s32.totalorder %s15, 1
      %p68 = scmp.ne.s32.totalorder %s63, %s65
      %p69 = scmp.eq.s32.totalorder %s15, 0
      %p70 = por %p68, %p69
      %p71 = scmp.ne.s32.totalorder %s63, %s65
      %p72 = scmp.eq.s32.totalorder %s20, 1
      %p73 = por %p71, %p72
      %p74 = scmp.ne.s32.totalorder %s65, %s66
      %p75 = scmp.eq.s32.totalorder %s20, 0
      %p76 = por %p74, %p75
      %p77 = scmp.ne.s32.totalorder %s65, %s66
      %p78 = scmp.eq.s32.totalorder %s21, 1
      %p79 = por %p77, %p78
      %p81 = scmp.ne.s32.totalorder %s66, %s80
      %p82 = scmp.eq.s32.totalorder %s21, 0
      %p83 = por %p81, %p82
      %s84 = ssub.s32 %s22, %s34
      %s85 = ssub.s32 %s23, %s30
      %s86 = sor.u32 %s84, %s85
      %p87 = scmp.eq.s32.totalorder %s86, 0
      %s89 = sadd.s32 %s88, 1
      %s90 = scalar_select %p87, %s88, %s89
      %p93 = pneg %p87
      %p94 = scmp.eq.s32.totalorder %s15, 1
      %p95 = por %p93, %p94
      %p96 = scmp.ne.s32.totalorder %s88, %s91
      %p97 = scmp.eq.s32.totalorder %s15, 0
      %p98 = por %p96, %p97
      %p99 = scmp.ne.s32.totalorder %s88, %s91
      %p100 = scmp.eq.s32.totalorder %s20, 1
      %p101 = por %p99, %p100
      %p102 = scmp.ne.s32.totalorder %s91, %s92
      %p103 = scmp.eq.s32.totalorder %s20, 0
      %p104 = por %p102, %p103
      %p105 = scmp.ne.s32.totalorder %s91, %s92
      %p106 = scmp.eq.s32.totalorder %s21, 1
      %p107 = por %p105, %p106
      %p109 = scmp.ne.s32.totalorder %s92, %s108
      %p110 = scmp.eq.s32.totalorder %s21, 0
      %p111 = por %p109, %p110
      %p112 = scmp.le.s32.totalorder 1, %s15
      %p113 = scmp.lt.s32.totalorder %s15, 3
      %p114 = pnand %p112, %p113
      %p115 = pneg %p114
      // Predicated region
      $region9: #{aux_up_block_pallas.2} parent=5 // pred_check
        _
      $region10: #{aux_up_block_pallas.2} parent=5 // pred_check_branch
        %117 = sbr.rel (%p114) target = $region12
      $region11: #{aux_up_block_pallas.2} parent=5 // pred_region
        %s118 = ssub.s32 %s15, 1
        // Predicated region
        $region13: #{aux_up_block_pallas.2} parent=11 // pred_check
          %p119 = pneg %p76
        $region14: #{aux_up_block_pallas.2} parent=11 // pred_check_branch
          %121 = sbr.rel (%p119) target = $region16
        $region15: #{aux_up_block_pallas.2} parent=11 // pred_region
          %s123 = ssub.s32 256, 256
          %124 = vsyncadd [#allocation6], %s123
          %s125 = sshll.u32 [#allocation5], 4
          %s126 = int_to_ptr.vmem [resolvable:$true] %s125
          %131 = dma.hbm_to_vmem [thread:$0]  %s1, 256, %s126, [#allocation6], 128, 128, 8
        $region16: #{aux_up_block_pallas.2} parent=11 // pred_fallthru
          _
      $region12: #{aux_up_block_pallas.2} parent=5 // pred_fallthru
        _
      %p132 = scmp.lt.s32.totalorder %s15, 2
      // Predicated region
      $region17: #{aux_up_block_pallas.2} parent=5 // pred_check
        %p133 = pneg %p132
      $region18: #{aux_up_block_pallas.2} parent=5 // pred_check_branch
        %135 = sbr.rel (%p133) target = $region20
      $region19: #{aux_up_block_pallas.2} parent=5 // pred_region
        // Predicated region
        $region21: #{aux_up_block_pallas.2} parent=19 // pred_check
          %p136 = pneg %p49
        $region22: #{aux_up_block_pallas.2} parent=19 // pred_check_branch
          %138 = sbr.rel (%p136) target = $region24
        $region23: #{aux_up_block_pallas.2} parent=19 // pred_region
          %s139 = sand.u32 %s39, 1
          %s140 = scalar_lea.sflag [#allocation3], %s139
          %s141 = sand.u32 %s39, 1
          %s142 = smul.addr %s141, 16
          %s143 = scalar_lea.vmem [#allocation2], %s142
          %s144 = smul.u32 2, %s23
          %s146 = ssub.s32 256, 256
          %147 = vsyncadd %s140, %s146
          %s148 = smul.addr %s22, 2
          %s149 = sadd.s32 %s144, %s148
          %s150 = smul.addr %s149, 128
          %s151 = scalar_lea.hbm %s0, %s150
          %s153 = sshll.u32 %s143, 4
          %s154 = int_to_ptr.vmem [resolvable:$true] %s153
          %156 = dma.hbm_to_vmem [thread:$0]  %s151, 256, %s154, %s140
        $region24: #{aux_up_block_pallas.2} parent=19 // pred_fallthru
          _
      $region20: #{aux_up_block_pallas.2} parent=5 // pred_fallthru
        _
      %p157 = scmp.le.s32.totalorder 1, %s15
      %p158 = scmp.lt.s32.totalorder %s15, 3
      %p159 = pnand %p157, %p158
      %p160 = pneg %p159
      // Predicated region
      $region25: #{aux_up_block_pallas.2} parent=5 // pred_check
        _
      $region26: #{aux_up_block_pallas.2} parent=5 // pred_check_branch
        %162 = sbr.rel (%p159) target = $region28
      $region27: #{aux_up_block_pallas.2} parent=5 // pred_region
        %s163 = ssub.s32 %s15, 1
        %s164 = sand.u32 %s42, 1
        %s165 = scalar_lea.sflag [#allocation3], %s164
        %s166 = sand.u32 %s42, 1
        %s167 = smul.addr %s166, 16
        %s168 = scalar_lea.vmem [#allocation2], %s167
        // Predicated region
        $region29: #{aux_up_block_pallas.2} parent=27 // pred_check
          %p169 = pneg %p55
        $region30: #{aux_up_block_pallas.2} parent=27 // pred_check_branch
          %171 = sbr.rel (%p169) target = $region32
        $region31: #{aux_up_block_pallas.2} parent=27 // pred_region
          %172 = dma.done %s165, 256
        $region32: #{aux_up_block_pallas.2} parent=27 // pred_fallthru
          _
        // Predicated region
        $region33: #{aux_up_block_pallas.2} parent=27 // pred_check
          %p173 = pneg %p76
        $region34: #{aux_up_block_pallas.2} parent=27 // pred_check_branch
          %175 = sbr.rel (%p173) target = $region36
        $region35: #{aux_up_block_pallas.2} parent=27 // pred_region
          %176 = dma.done [#allocation6], 256
        $region36: #{aux_up_block_pallas.2} parent=27 // pred_fallthru
          _
        %s177 = sand.u32 %s42, 1
        %s178 = scalar_lea.sflag [#allocation3], %s177
        %s179 = sand.u32 %s42, 1
        %s180 = smul.addr %s179, 16
        %s181 = scalar_lea.vmem [#allocation2], %s180
        %p182 = pneg %p55
        %p183 = pneg %p52
        %p184 = pneg %p76
        %p185 = pneg %p73
        %p186 = pneg %p104
        %p187 = pneg %p101
        %s188 = sand.u32 %s91, 1
        %s189 = scalar_lea.sflag [#allocation4], %s188
        %s190 = sand.u32 %s91, 1
        %s191 = smul.addr %s190, 16
        %s192 = scalar_lea.vmem [#allocation7], %s191
        %s193 = smul.u32 2, %s25
        %v194 = vld [vmem:[#allocation5] sm:$0xff]
        %v195 = vld [vmem:[#allocation5 + $0x8] sm:$0xff]
        %v196 = vld [vmem:[%s168] sm:$0xff]
        %v197 = vld [vmem:[%s168 + $0x8] sm:$0xff]
        %vm198 = vcmask 64512
        %v200 = vsel %vm198, %v194, 0
        %v203 = vsel %vm198, %v195, 0
        %205 = vmatprep.subr.mxu0 %v197
        %206 = vmatpush1.msra.mxu0 %v196
        %207 = vmatprep.subr.mxu0 0.0
        %208 = vmatpush1.msra.mxu0 0.0
        %209 = vmatprep.subr.mxu0 0.0
        %210 = vmatpush1.msra.mxu0 0.0
        %211 = vmatprep.subr.mxu0 0.0
        %212 = vmatpush1.msra.mxu0 0.0
        %213 = vmatprep.subr.mxu0 0.0
        %214 = vmatpush1.msra.mxu0 0.0
        %215 = vmatprep.subr.mxu0 0.0
        %216 = vmatpush1.msra.mxu0 0.0
        %217 = vmatprep.subr.mxu0 0.0
        %218 = vmatpush1.msra.mxu0 0.0
        %219 = vmatprep.subr.mxu0 0.0
        %220 = vmatpush1.msra.mxu0 0.0
        %221 = vmatprep.subr.mxu0 0.0
        %222 = vmatpush1.msra.mxu0 0.0
        %223 = vmatprep.subr.mxu0 0.0
        %224 = vmatpush1.msra.mxu0 0.0
        %225 = vmatprep.subr.mxu0 0.0
        %226 = vmatpush1.msra.mxu0 0.0
        %227 = vmatprep.subr.mxu0 0.0
        %228 = vmatpush1.msra.mxu0 0.0
        %229 = vmatprep.subr.mxu0 0.0
        %230 = vmatpush1.msra.mxu0 0.0
        %231 = vmatprep.subr.mxu0 0.0
        %232 = vmatpush1.msra.mxu0 0.0
        %233 = vmatprep.subr.mxu0 0.0
        %234 = vmatpush1.msra.mxu0 0.0
        %235 = vmatprep.subr.mxu0 0.0
        %236 = vmatpush1.msra.mxu0 0.0
        %237 = vmatprep.subr.mxu0 0.0
        %238 = vmatpush1.msra.mxu0 0.0
        %239 = vmatprep.subr.mxu0 0.0
        %240 = vmatpush1.msra.mxu0 0.0
        %241 = vmatprep.subr.mxu0 0.0
        %242 = vmatpush1.msra.mxu0 0.0
        %243 = vmatprep.subr.mxu0 0.0
        %244 = vmatpush1.msra.mxu0 0.0
        %245 = vmatprep.subr.mxu0 0.0
        %246 = vmatpush1.msra.mxu0 0.0
        %247 = vmatprep.subr.mxu0 0.0
        %248 = vmatpush1.msra.mxu0 0.0
        %249 = vmatprep.subr.mxu0 0.0
        %250 = vmatpush1.msra.mxu0 0.0
        %251 = vmatprep.subr.mxu0 0.0
        %252 = vmatpush1.msra.mxu0 0.0
        %253 = vmatprep.subr.mxu0 0.0
        %254 = vmatpush1.msra.mxu0 0.0
        %255 = vmatprep.subr.mxu0 0.0
        %256 = vmatpush1.msra.mxu0 0.0
        %257 = vmatprep.subr.mxu0 0.0
        %258 = vmatpush1.msra.mxu0 0.0
        %259 = vmatprep.subr.mxu0 0.0
        %260 = vmatpush1.msra.mxu0 0.0
        %261 = vmatprep.subr.mxu0 0.0
        %262 = vmatpush1.msra.mxu0 0.0
        %263 = vmatprep.subr.mxu0 0.0
        %264 = vmatpush1.msra.mxu0 0.0
        %265 = vmatprep.subr.mxu0 0.0
        %266 = vmatpush1.msra.mxu0 0.0
        %267 = vmatprep.subr.mxu0 0.0
        %268 = vmatpush1.msra.mxu0 0.0
        %269 = vmatprep.mubr.f32.mxu0 0.0
        %270 = vmatmul.mubr.f32.gmra.mrb[0].mxu0 %v200
        %v271 = vpop.f32.mrb[0].mxu0
        %v272 = vadd.f32 0.0, %v271
        %v273 = vpop.f32.mrb[0].mxu0
        %v274 = vadd.f32 0.0, %v273
        %275 = vmatprep.mubr.f32.mxu0 0.0
        %276 = vmatmul.mubr.f32.gmra.mrb[0].mxu0 %v203
        %v277 = vpop.f32.mrb[0].mxu0
        %v278 = vadd.f32 0.0, %v277
        %v279 = vpop.f32.mrb[0].mxu0
        %v280 = vadd.f32 0.0, %v279
        %281 = vdwg.mxu0
        %v282 = vadd.f32 %v272, %v274
        %283 = vadd.xlane.f32.xlu0 %v282
        %v284 = vpop.xlane.xlu0 %283
        %v285 = vadd.f32 %v278, %v280
        %286 = vadd.xlane.f32.xlu0 %v285
        %v287 = vpop.xlane.xlu0 %286
        %v288 = vmul.f32 %v272, %v272
        %v289 = vmul.f32 %v274, %v274
        %v290 = vmul.f32 %v278, %v278
        %v291 = vmul.f32 %v280, %v280
        %v292 = vadd.f32 %v288, %v289
        %293 = vadd.xlane.f32.xlu0 %v292
        %v294 = vpop.xlane.xlu0 %293
        %v295 = vadd.f32 %v290, %v291
        %296 = vadd.xlane.f32.xlu0 %v295
        %v297 = vpop.xlane.xlu0 %296
        %vm298 = vcmask 7168
        %v299 = vsel %vm298, %v284, %v294
        %v300 = vsel %vm298, %v287, %v297
        %vm301 = vcmask 15360
        %302 = vst.msk [vmem:[%s192] sm:$0xff] %vm301, %v299
        %303 = vst.msk [vmem:[%s192 + $0x8] sm:$0xff] %vm301, %v300
        %s304 = sand.u32 %s91, 1
        %s305 = scalar_lea.sflag [#allocation4], %s304
        %s306 = sand.u32 %s91, 1
        %s307 = smul.addr %s306, 16
        %s308 = scalar_lea.vmem [#allocation7], %s307
        // Predicated region
        $region37: #{aux_up_block_pallas.2} parent=27 // pred_check
          %p309 = pneg %p101
        $region38: #{aux_up_block_pallas.2} parent=27 // pred_check_branch
          %311 = sbr.rel (%p309) target = $region40
        $region39: #{aux_up_block_pallas.2} parent=27 // pred_region
          %s313 = ssub.s32 256, 256
          %314 = vsyncadd %s305, %s313
          %s315 = smul.addr %s25, 2
          %s316 = smul.addr %s24, 2
          %s317 = sadd.s32 %s315, %s316
          %s318 = smul.addr %s317, 128
          %s319 = scalar_lea.hbm %s2, %s318
          %s320 = sshll.u32 %s308, 4
          %s321 = int_to_ptr.vmem [resolvable:$true] %s320
          %326 = dma.vmem_to_hbm [thread:$0]  %s321, 256, %s319, %s305, 128, 128, 8
        $region40: #{aux_up_block_pallas.2} parent=27 // pred_fallthru
          _
      $region28: #{aux_up_block_pallas.2} parent=5 // pred_fallthru
        _
      %p327 = scmp.le.s32.totalorder 2, %s15
      // Predicated region
      $region41: #{aux_up_block_pallas.2} parent=5 // pred_check
        %p328 = pneg %p327
      $region42: #{aux_up_block_pallas.2} parent=5 // pred_check_branch
        %330 = sbr.rel (%p328) target = $region44
      $region43: #{aux_up_block_pallas.2} parent=5 // pred_region
        %s331 = ssub.s32 %s15, 2
        // Predicated region
        $region45: #{aux_up_block_pallas.2} parent=43 // pred_check
          %p332 = pneg %p107
        $region46: #{aux_up_block_pallas.2} parent=43 // pred_check_branch
          %334 = sbr.rel (%p332) target = $region48
        $region47: #{aux_up_block_pallas.2} parent=43 // pred_region
          %s335 = sand.u32 %s92, 1
          %s336 = scalar_lea.sflag [#allocation4], %s335
          %s337 = sand.u32 %s92, 1
          %s338 = smul.addr %s337, 16
          %s339 = scalar_lea.vmem [#allocation7], %s338
          %340 = dma.done %s336, 256
        $region48: #{aux_up_block_pallas.2} parent=43 // pred_fallthru
          _
      $region44: #{aux_up_block_pallas.2} parent=5 // pred_fallthru
        _
    $region6: #{aux_up_block_pallas.2} parent=1 // loop_footer
      %s19 = sadd.s32 1, %s15
    $region7: #{aux_up_block_pallas.2} parent=1 // loop_footer_branch
      %14 = sbr.rel target = $region3
    $region8: #{aux_up_block_pallas.2} parent=1 // loop_exit
      _
    %341 = vsyncpa [#allocation3], 1
    %s342 = scalar_lea.sflag [#allocation3], 1
    %343 = vsyncpa %s342, 1
    %344 = vsyncpa [#allocation6], 1
    %345 = vsyncpa [#allocation4], 1
    %s346 = scalar_lea.sflag [#allocation4], 1
    %347 = vsyncpa %s346, 1

// kernel: aux_up_block_pallas.3
$region0: #{aux_up_block_pallas.3}
  #allocation0 [shape = 'u32[]', space=smem, size = 0x4, offset = 0x4, fixed_abs, tag = 'smem constant byte address 0x4 - core index']
  #allocation1 [shape = 'u32[144,128]{1,0:T(1,128)}', space=vmem, size = 0x12000, scoped, tag = 'internal scratch']
  %s0 = inlined_call_operand.hbm [shape: f32[2,8,256], index: 0, kind: input, shape index: {}]
  %s1 = inlined_call_operand.hbm [shape: f32[16,8], index: 1, kind: input, shape index: {}]
  %s2 = inlined_call_operand.hbm [shape: f32[16,1], index: 2, kind: input, shape index: {}]
  %s3 = inlined_call_operand.hbm [shape: f32[16,1], index: 3, kind: input, shape index: {}]
  %s4 = inlined_call_operand.hbm [shape: f32[2,16,256], index: 4, kind: output, shape index: {}]
  %s5 = sld [smem:[#allocation0]]
  $region65: #{aux_up_block_pallas.3} parent=0
    _
  %s7 = ssub.s32 1, %s5
  %s8 = scalar_select 0, %s7, %s5
  $region1: #{aux_up_block_pallas.3} parent=0
    #allocation2 [shape = 'u8[16384]{0}', space=vmem, size = 0x4000, scoped, tag = 'input window, operand 0']
    #allocation3 [shape = 's32[2]{0}', space=sflag, size = 0x8, scoped, tag = 'scoped memory for aux_up_block_pallas.3']
    #allocation4 [shape = 's32[2]{0}', space=sflag, size = 0x8, scoped, tag = 'scoped memory for aux_up_block_pallas.3']
    #allocation5 [shape = 'u8[8192]{0}', space=vmem, size = 0x2000, scoped, tag = 'input window, operand 1, single buffered']
    #allocation6 [shape = 's32[1]{0}', space=sflag, size = 0x4, scoped, tag = 'scoped memory for aux_up_block_pallas.3']
    #allocation7 [shape = 'u8[8192]{0}', space=vmem, size = 0x2000, scoped, tag = 'input window, operand 2, single buffered']
    #allocation8 [shape = 'u8[8192]{0}', space=vmem, size = 0x2000, scoped, tag = 'input window, operand 3, single buffered']
    #allocation9 [shape = 's32[1]{0}', space=sflag, size = 0x4, scoped, tag = 'scoped memory for aux_up_block_pallas.3']
    #allocation10 [shape = 'u8[32768]{0}', space=vmem, size = 0x8000, scoped, tag = 'output window, operand 0']
    %9 = vsyncpa [#allocation3], 0
    %s10 = scalar_lea.sflag [#allocation3], 1
    %11 = vsyncpa %s10, 0
    %12 = vsyncpa [#allocation6], 0
    %13 = vsyncpa [#allocation9], 0
    %14 = vsyncpa [#allocation4], 0
    %s15 = scalar_lea.sflag [#allocation4], 1
    %16 = vsyncpa %s15, 0
    loop: start=0, step=1, limit=4
    $region2: #{aux_up_block_pallas.3} parent=1 // loop_pre_header
      _
    $region3: #{aux_up_block_pallas.3} parent=1 // loop_header
      %s18 = sphi 0, %s22
      %p19 = scmp.ge.s32.totalorder %s18, 4
      %s25 = sphi 0, %s37
      %s26 = sphi 0, %s33
      %s27 = sphi 0, %s25
      %s28 = sphi 0, %s26
      %s29 = sphi 0, %s27
      %s30 = sphi 0, %s28
      %s42 = sphi 0, %s44
      %s45 = sphi 0, %s42
      %s46 = sphi 0, %s45
      %s62 = sphi 0, %s46
      %s66 = sphi 0, %s66
      %s68 = sphi 0, %s66
      %s69 = sphi 0, %s68
      %s83 = sphi 0, %s69
      %s87 = sphi 0, %s87
      %s89 = sphi 0, %s87
      %s90 = sphi 0, %s89
      %s104 = sphi 0, %s90
      %s108 = sphi 0, %s108
      %s110 = sphi 0, %s108
      %s111 = sphi 0, %s110
      %s125 = sphi 0, %s111
      %s133 = sphi 0, %s135
      %s136 = sphi 0, %s133
      %s137 = sphi 0, %s136
      %s153 = sphi 0, %s137
    $region4: #{aux_up_block_pallas.3} parent=1 // loop_header_branch
      %21 = sbr.rel (%p19) target = $region8
    $region5: #{aux_up_block_pallas.3} parent=1 // loop_body
      %s23 = ssub.s32 %s18, 1
      %s24 = ssub.s32 %s18, 2
      %s31 = sadd.s32 1, %s26
      %p32 = scmp.ge.s32.totalorder %s31, 1
      %s33 = scalar_select %p32, 0, %s31
      %s34 = sadd.s32 1, %s25
      %s35 = scalar_select %p32, %s34, %s25
      %p36 = scmp.ge.s32.totalorder %s35, 2
      %s37 = scalar_select %p36, 0, %s35
      %s38 = ssub.s32 %s25, %s37
      %s39 = ssub.s32 %s26, %s33
      %s40 = sor.u32 %s38, %s39
      %p41 = scmp.eq.s32.totalorder %s40, 0
      %s43 = sadd.s32 %s42, 1
      %s44 = scalar_select %p41, %s42, %s43
      %p47 = pneg %p41
      %p48 = scmp.eq.s32.totalorder %s18, 1
      %p49 = por %p47, %p48
      %p50 = scmp.ne.s32.totalorder %s42, %s45
      %p51 = scmp.eq.s32.totalorder %s18, 0
      %p52 = por %p50, %p51
      %p53 = scmp.ne.s32.totalorder %s42, %s45
      %p54 = scmp.eq.s32.totalorder %s23, 1
      %p55 = por %p53, %p54
      %p56 = scmp.ne.s32.totalorder %s45, %s46
      %p57 = scmp.eq.s32.totalorder %s23, 0
      %p58 = por %p56, %p57
      %p59 = scmp.ne.s32.totalorder %s45, %s46
      %p60 = scmp.eq.s32.totalorder %s24, 1
      %p61 = por %p59, %p60
      %p63 = scmp.ne.s32.totalorder %s46, %s62
      %p64 = scmp.eq.s32.totalorder %s24, 0
      %p65 = por %p63, %p64
      %s67 = sadd.s32 %s66, 1
      %p70 = scmp.eq.s32.totalorder %s18, 1
      %p71 = scmp.ne.s32.totalorder %s66, %s68
      %p72 = scmp.eq.s32.totalorder %s18, 0
      %p73 = por %p71, %p72
      %p74 = scmp.ne.s32.totalorder %s66, %s68
      %p75 = scmp.eq.s32.totalorder %s23, 1
      %p76 = por %p74, %p75
      %p77 = scmp.ne.s32.totalorder %s68, %s69
      %p78 = scmp.eq.s32.totalorder %s23, 0
      %p79 = por %p77, %p78
      %p80 = scmp.ne.s32.totalorder %s68, %s69
      %p81 = scmp.eq.s32.totalorder %s24, 1
      %p82 = por %p80, %p81
      %p84 = scmp.ne.s32.totalorder %s69, %s83
      %p85 = scmp.eq.s32.totalorder %s24, 0
      %p86 = por %p84, %p85
      %s88 = sadd.s32 %s87, 1
      %p91 = scmp.eq.s32.totalorder %s18, 1
      %p92 = scmp.ne.s32.totalorder %s87, %s89
      %p93 = scmp.eq.s32.totalorder %s18, 0
      %p94 = por %p92, %p93
      %p95 = scmp.ne.s32.totalorder %s87, %s89
      %p96 = scmp.eq.s32.totalorder %s23, 1
      %p97 = por %p95, %p96
      %p98 = scmp.ne.s32.totalorder %s89, %s90
      %p99 = scmp.eq.s32.totalorder %s23, 0
      %p100 = por %p98, %p99
      %p101 = scmp.ne.s32.totalorder %s89, %s90
      %p102 = scmp.eq.s32.totalorder %s24, 1
      %p103 = por %p101, %p102
      %p105 = scmp.ne.s32.totalorder %s90, %s104
      %p106 = scmp.eq.s32.totalorder %s24, 0
      %p107 = por %p105, %p106
      %s109 = sadd.s32 %s108, 1
      %p112 = scmp.eq.s32.totalorder %s18, 1
      %p113 = scmp.ne.s32.totalorder %s108, %s110
      %p114 = scmp.eq.s32.totalorder %s18, 0
      %p115 = por %p113, %p114
      %p116 = scmp.ne.s32.totalorder %s108, %s110
      %p117 = scmp.eq.s32.totalorder %s23, 1
      %p118 = por %p116, %p117
      %p119 = scmp.ne.s32.totalorder %s110, %s111
      %p120 = scmp.eq.s32.totalorder %s23, 0
      %p121 = por %p119, %p120
      %p122 = scmp.ne.s32.totalorder %s110, %s111
      %p123 = scmp.eq.s32.totalorder %s24, 1
      %p124 = por %p122, %p123
      %p126 = scmp.ne.s32.totalorder %s111, %s125
      %p127 = scmp.eq.s32.totalorder %s24, 0
      %p128 = por %p126, %p127
      %s129 = ssub.s32 %s25, %s37
      %s130 = ssub.s32 %s26, %s33
      %s131 = sor.u32 %s129, %s130
      %p132 = scmp.eq.s32.totalorder %s131, 0
      %s134 = sadd.s32 %s133, 1
      %s135 = scalar_select %p132, %s133, %s134
      %p138 = pneg %p132
      %p139 = scmp.eq.s32.totalorder %s18, 1
      %p140 = por %p138, %p139
      %p141 = scmp.ne.s32.totalorder %s133, %s136
      %p142 = scmp.eq.s32.totalorder %s18, 0
      %p143 = por %p141, %p142
      %p144 = scmp.ne.s32.totalorder %s133, %s136
      %p145 = scmp.eq.s32.totalorder %s23, 1
      %p146 = por %p144, %p145
      %p147 = scmp.ne.s32.totalorder %s136, %s137
      %p148 = scmp.eq.s32.totalorder %s23, 0
      %p149 = por %p147, %p148
      %p150 = scmp.ne.s32.totalorder %s136, %s137
      %p151 = scmp.eq.s32.totalorder %s24, 1
      %p152 = por %p150, %p151
      %p154 = scmp.ne.s32.totalorder %s137, %s153
      %p155 = scmp.eq.s32.totalorder %s24, 0
      %p156 = por %p154, %p155
      %p157 = scmp.le.s32.totalorder 1, %s18
      %p158 = scmp.lt.s32.totalorder %s18, 3
      %p159 = pnand %p157, %p158
      %p160 = pneg %p159
      // Predicated region
      $region9: #{aux_up_block_pallas.3} parent=5 // pred_check
        _
      $region10: #{aux_up_block_pallas.3} parent=5 // pred_check_branch
        %162 = sbr.rel (%p159) target = $region12
      $region11: #{aux_up_block_pallas.3} parent=5 // pred_region
        %s163 = ssub.s32 %s18, 1
        // Predicated region
        $region13: #{aux_up_block_pallas.3} parent=11 // pred_check
          %p164 = pneg %p79
        $region14: #{aux_up_block_pallas.3} parent=11 // pred_check_branch
          %166 = sbr.rel (%p164) target = $region16
        $region15: #{aux_up_block_pallas.3} parent=11 // pred_region
          %s168 = ssub.s32 256, 256
          %169 = vsyncadd [#allocation6], %s168
          %s170 = sshll.u32 [#allocation5], 4
          %s171 = int_to_ptr.vmem [resolvable:$true] %s170
          %176 = dma.hbm_to_vmem [thread:$0]  %s1, 256, %s171, [#allocation6], 128, 128, 8
        $region16: #{aux_up_block_pallas.3} parent=11 // pred_fallthru
          _
        // Predicated region
        $region17: #{aux_up_block_pallas.3} parent=11 // pred_check
          %p177 = pneg %p100
        $region18: #{aux_up_block_pallas.3} parent=11 // pred_check_branch
          %179 = sbr.rel (%p177) target = $region20
        $region19: #{aux_up_block_pallas.3} parent=11 // pred_region
          %s181 = ssub.s32 256, 256
          %182 = vsyncadd [#allocation6], %s181
          %s183 = sshll.u32 [#allocation7], 4
          %s184 = int_to_ptr.vmem [resolvable:$true] %s183
          %189 = dma.hbm_to_vmem [thread:$0]  %s2, 256, %s184, [#allocation6], 128, 128, 8
        $region20: #{aux_up_block_pallas.3} parent=11 // pred_fallthru
          _
        // Predicated region
        $region21: #{aux_up_block_pallas.3} parent=11 // pred_check
          %p190 = pneg %p121
        $region22: #{aux_up_block_pallas.3} parent=11 // pred_check_branch
          %192 = sbr.rel (%p190) target = $region24
        $region23: #{aux_up_block_pallas.3} parent=11 // pred_region
          %s194 = ssub.s32 256, 256
          %195 = vsyncadd [#allocation9], %s194
          %s196 = sshll.u32 [#allocation8], 4
          %s197 = int_to_ptr.vmem [resolvable:$true] %s196
          %202 = dma.hbm_to_vmem [thread:$0]  %s3, 256, %s197, [#allocation9], 128, 128, 8
        $region24: #{aux_up_block_pallas.3} parent=11 // pred_fallthru
          _
      $region12: #{aux_up_block_pallas.3} parent=5 // pred_fallthru
        _
      %p203 = scmp.lt.s32.totalorder %s18, 2
      // Predicated region
      $region25: #{aux_up_block_pallas.3} parent=5 // pred_check
        %p204 = pneg %p203
      $region26: #{aux_up_block_pallas.3} parent=5 // pred_check_branch
        %206 = sbr.rel (%p204) target = $region28
      $region27: #{aux_up_block_pallas.3} parent=5 // pred_region
        // Predicated region
        $region29: #{aux_up_block_pallas.3} parent=27 // pred_check
          %p207 = pneg %p52
        $region30: #{aux_up_block_pallas.3} parent=27 // pred_check_branch
          %209 = sbr.rel (%p207) target = $region32
        $region31: #{aux_up_block_pallas.3} parent=27 // pred_region
          %s210 = sand.u32 %s42, 1
          %s211 = scalar_lea.sflag [#allocation3], %s210
          %s212 = sand.u32 %s42, 1
          %s213 = smul.addr %s212, 16
          %s214 = scalar_lea.vmem [#allocation2], %s213
          %s215 = smul.u32 2, %s26
          %s217 = ssub.s32 256, 256
          %218 = vsyncadd %s211, %s217
          %s219 = smul.addr %s25, 2
          %s220 = sadd.s32 %s215, %s219
          %s221 = smul.addr %s220, 128
          %s222 = scalar_lea.hbm %s0, %s221
          %s224 = sshll.u32 %s214, 4
          %s225 = int_to_ptr.vmem [resolvable:$true] %s224
          %227 = dma.hbm_to_vmem [thread:$0]  %s222, 256, %s225, %s211
        $region32: #{aux_up_block_pallas.3} parent=27 // pred_fallthru
          _
      $region28: #{aux_up_block_pallas.3} parent=5 // pred_fallthru
        _
      %p228 = scmp.le.s32.totalorder 1, %s18
      %p229 = scmp.lt.s32.totalorder %s18, 3
      %p230 = pnand %p228, %p229
      %p231 = pneg %p230
      // Predicated region
      $region33: #{aux_up_block_pallas.3} parent=5 // pred_check
        _
      $region34: #{aux_up_block_pallas.3} parent=5 // pred_check_branch
        %233 = sbr.rel (%p230) target = $region36
      $region35: #{aux_up_block_pallas.3} parent=5 // pred_region
        %s234 = ssub.s32 %s18, 1
        %s235 = sand.u32 %s45, 1
        %s236 = scalar_lea.sflag [#allocation3], %s235
        %s237 = sand.u32 %s45, 1
        %s238 = smul.addr %s237, 16
        %s239 = scalar_lea.vmem [#allocation2], %s238
        // Predicated region
        $region37: #{aux_up_block_pallas.3} parent=35 // pred_check
          %p240 = pneg %p58
        $region38: #{aux_up_block_pallas.3} parent=35 // pred_check_branch
          %242 = sbr.rel (%p240) target = $region40
        $region39: #{aux_up_block_pallas.3} parent=35 // pred_region
          %243 = dma.done %s236, 256
        $region40: #{aux_up_block_pallas.3} parent=35 // pred_fallthru
          _
        // Predicated region
        $region41: #{aux_up_block_pallas.3} parent=35 // pred_check
          %p244 = pneg %p79
        $region42: #{aux_up_block_pallas.3} parent=35 // pred_check_branch
          %246 = sbr.rel (%p244) target = $region44
        $region43: #{aux_up_block_pallas.3} parent=35 // pred_region
          %247 = dma.done [#allocation6], 256
        $region44: #{aux_up_block_pallas.3} parent=35 // pred_fallthru
          _
        // Predicated region
        $region45: #{aux_up_block_pallas.3} parent=35 // pred_check
          %p248 = pneg %p100
        $region46: #{aux_up_block_pallas.3} parent=35 // pred_check_branch
          %250 = sbr.rel (%p248) target = $region48
        $region47: #{aux_up_block_pallas.3} parent=35 // pred_region
          %251 = dma.done [#allocation6], 256
        $region48: #{aux_up_block_pallas.3} parent=35 // pred_fallthru
          _
        // Predicated region
        $region49: #{aux_up_block_pallas.3} parent=35 // pred_check
          %p252 = pneg %p121
        $region50: #{aux_up_block_pallas.3} parent=35 // pred_check_branch
          %254 = sbr.rel (%p252) target = $region52
        $region51: #{aux_up_block_pallas.3} parent=35 // pred_region
          %255 = dma.done [#allocation9], 256
        $region52: #{aux_up_block_pallas.3} parent=35 // pred_fallthru
          _
        %s256 = sand.u32 %s45, 1
        %s257 = scalar_lea.sflag [#allocation3], %s256
        %s258 = sand.u32 %s45, 1
        %s259 = smul.addr %s258, 16
        %s260 = scalar_lea.vmem [#allocation2], %s259
        %p261 = pneg %p58
        %p262 = pneg %p55
        %p263 = pneg %p79
        %p264 = pneg %p76
        %p265 = pneg %p100
        %p266 = pneg %p97
        %p267 = pneg %p121
        %p268 = pneg %p118
        %p269 = pneg %p149
        %p270 = pneg %p146
        %s271 = sand.u32 %s136, 1
        %s272 = scalar_lea.sflag [#allocation4], %s271
        %s273 = sand.u32 %s136, 1
        %s274 = smul.addr %s273, 32
        %s275 = scalar_lea.vmem [#allocation10], %s274
        %s276 = smul.u32 2, %s28
        %s277 = smul.u32 2, %s28
        %v278 = vld [vmem:[#allocation5] sm:$0xff]
        %v279 = vld [vmem:[#allocation5 + $0x8] sm:$0xff]
        %v280 = vld [vmem:[%s239] sm:$0xff]
        %v281 = vld [vmem:[%s239 + $0x8] sm:$0xff]
        %vm282 = vcmask 64512
        %v284 = vsel %vm282, %v278, 0
        %v287 = vsel %vm282, %v279, 0
        %289 = vmatprep.subr.mxu0 %v281
        %290 = vmatpush1.msra.mxu0 %v280
        %291 = vmatprep.subr.mxu0 0.0
        %292 = vmatpush1.msra.mxu0 0.0
        %293 = vmatprep.subr.mxu0 0.0
        %294 = vmatpush1.msra.mxu0 0.0
        %295 = vmatprep.subr.mxu0 0.0
        %296 = vmatpush1.msra.mxu0 0.0
        %297 = vmatprep.subr.mxu0 0.0
        %298 = vmatpush1.msra.mxu0 0.0
        %299 = vmatprep.subr.mxu0 0.0
        %300 = vmatpush1.msra.mxu0 0.0
        %301 = vmatprep.subr.mxu0 0.0
        %302 = vmatpush1.msra.mxu0 0.0
        %303 = vmatprep.subr.mxu0 0.0
        %304 = vmatpush1.msra.mxu0 0.0
        %305 = vmatprep.subr.mxu0 0.0
        %306 = vmatpush1.msra.mxu0 0.0
        %307 = vmatprep.subr.mxu0 0.0
        %308 = vmatpush1.msra.mxu0 0.0
        %309 = vmatprep.subr.mxu0 0.0
        %310 = vmatpush1.msra.mxu0 0.0
        %311 = vmatprep.subr.mxu0 0.0
        %312 = vmatpush1.msra.mxu0 0.0
        %313 = vmatprep.subr.mxu0 0.0
        %314 = vmatpush1.msra.mxu0 0.0
        %315 = vmatprep.subr.mxu0 0.0
        %316 = vmatpush1.msra.mxu0 0.0
        %317 = vmatprep.subr.mxu0 0.0
        %318 = vmatpush1.msra.mxu0 0.0
        %319 = vmatprep.subr.mxu0 0.0
        %320 = vmatpush1.msra.mxu0 0.0
        %321 = vmatprep.subr.mxu0 0.0
        %322 = vmatpush1.msra.mxu0 0.0
        %323 = vmatprep.subr.mxu0 0.0
        %324 = vmatpush1.msra.mxu0 0.0
        %325 = vmatprep.subr.mxu0 0.0
        %326 = vmatpush1.msra.mxu0 0.0
        %327 = vmatprep.subr.mxu0 0.0
        %328 = vmatpush1.msra.mxu0 0.0
        %329 = vmatprep.subr.mxu0 0.0
        %330 = vmatpush1.msra.mxu0 0.0
        %331 = vmatprep.subr.mxu0 0.0
        %332 = vmatpush1.msra.mxu0 0.0
        %333 = vmatprep.subr.mxu0 0.0
        %334 = vmatpush1.msra.mxu0 0.0
        %335 = vmatprep.subr.mxu0 0.0
        %336 = vmatpush1.msra.mxu0 0.0
        %337 = vmatprep.subr.mxu0 0.0
        %338 = vmatpush1.msra.mxu0 0.0
        %339 = vmatprep.subr.mxu0 0.0
        %340 = vmatpush1.msra.mxu0 0.0
        %341 = vmatprep.subr.mxu0 0.0
        %342 = vmatpush1.msra.mxu0 0.0
        %343 = vmatprep.subr.mxu0 0.0
        %344 = vmatpush1.msra.mxu0 0.0
        %345 = vmatprep.subr.mxu0 0.0
        %346 = vmatpush1.msra.mxu0 0.0
        %347 = vmatprep.subr.mxu0 0.0
        %348 = vmatpush1.msra.mxu0 0.0
        %349 = vmatprep.subr.mxu0 0.0
        %350 = vmatpush1.msra.mxu0 0.0
        %351 = vmatprep.subr.mxu0 0.0
        %352 = vmatpush1.msra.mxu0 0.0
        %353 = vmatprep.mubr.f32.mxu0 0.0
        %354 = vmatmul.mubr.f32.gmra.mrb[0].mxu0 %v284
        %v355 = vpop.f32.mrb[0].mxu0
        %v356 = vadd.f32 0.0, %v355
        %v357 = vpop.f32.mrb[0].mxu0
        %v358 = vadd.f32 0.0, %v357
        %359 = vmatprep.mubr.f32.mxu0 0.0
        %360 = vmatmul.mubr.f32.gmra.mrb[0].mxu0 %v287
        %v361 = vpop.f32.mrb[0].mxu0
        %v362 = vadd.f32 0.0, %v361
        %v363 = vpop.f32.mrb[0].mxu0
        %v364 = vadd.f32 0.0, %v363
        %365 = vdwg.mxu0
        %v366 = vld [vmem:[#allocation7] sm:$0xff]
        %v367 = vld [vmem:[#allocation7 + $0x8] sm:$0xff]
        %369 = vset.pattern.permute.xlu0 0
        %370 = vperm.xlu0 %369, %v366
        %v371 = vpop.permute.xlu0 %370
        %374 = vset.pattern.permute.xlu0 0
        %375 = vperm.xlu0 %374, %v367
        %v376 = vpop.permute.xlu0 %375
        %v378 = vmul.f32 %v356, %v371
        %v379 = vmul.f32 %v358, %v371
        %v380 = vmul.f32 %v362, %v376
        %v381 = vmul.f32 %v364, %v376
        %v382 = vld [vmem:[#allocation8] sm:$0xff]
        %v383 = vld [vmem:[#allocation8 + $0x8] sm:$0xff]
        %385 = vset.pattern.permute.xlu0 0
        %386 = vperm.xlu0 %385, %v382
        %v387 = vpop.permute.xlu0 %386
        %390 = vset.pattern.permute.xlu0 0
        %391 = vperm.xlu0 %390, %v383
        %v392 = vpop.permute.xlu0 %391
        %v394 = vadd.f32 %v378, %v387
        %v395 = vadd.f32 %v379, %v387
        %v396 = vadd.f32 %v380, %v392
        %v397 = vadd.f32 %v381, %v392
        %v398 = vmax.f32 %v394, 0.0
        %v399 = vmax.f32 %v395, 0.0
        %v400 = vmax.f32 %v396, 0.0
        %v401 = vmax.f32 %v397, 0.0
        %402 = vst [vmem:[%s275] sm:$0xff] %v398
        %403 = vst [vmem:[%s275 + $0x8] sm:$0xff] %v399
        %404 = vst [vmem:[%s275 + $0x10] sm:$0xff] %v400
        %405 = vst [vmem:[%s275 + $0x18] sm:$0xff] %v401
        %s406 = sand.u32 %s136, 1
        %s407 = scalar_lea.sflag [#allocation4], %s406
        %s408 = sand.u32 %s136, 1
        %s409 = smul.addr %s408, 32
        %s410 = scalar_lea.vmem [#allocation10], %s409
        // Predicated region
        $region53: #{aux_up_block_pallas.3} parent=35 // pred_check
          %p411 = pneg %p146
        $region54: #{aux_up_block_pallas.3} parent=35 // pred_check_branch
          %413 = sbr.rel (%p411) target = $region56
        $region55: #{aux_up_block_pallas.3} parent=35 // pred_region
          %s414 = smul.u32 2, %s28
          %s416 = ssub.s32 512, 512
          %417 = vsyncadd %s407, %s416
          %s418 = smul.addr %s27, 4
          %s419 = sadd.s32 %s414, %s418
          %s420 = smul.addr %s419, 128
          %s421 = scalar_lea.hbm %s4, %s420
          %s422 = sshll.u32 %s410, 4
          %s423 = int_to_ptr.vmem [resolvable:$true] %s422
          %428 = dma.vmem_to_hbm [thread:$0]  %s423, 512, %s421, %s407, 256, 256, 16
        $region56: #{aux_up_block_pallas.3} parent=35 // pred_fallthru
          _
      $region36: #{aux_up_block_pallas.3} parent=5 // pred_fallthru
        _
      %p429 = scmp.le.s32.totalorder 2, %s18
      // Predicated region
      $region57: #{aux_up_block_pallas.3} parent=5 // pred_check
        %p430 = pneg %p429
      $region58: #{aux_up_block_pallas.3} parent=5 // pred_check_branch
        %432 = sbr.rel (%p430) target = $region60
      $region59: #{aux_up_block_pallas.3} parent=5 // pred_region
        %s433 = ssub.s32 %s18, 2
        // Predicated region
        $region61: #{aux_up_block_pallas.3} parent=59 // pred_check
          %p434 = pneg %p152
        $region62: #{aux_up_block_pallas.3} parent=59 // pred_check_branch
          %436 = sbr.rel (%p434) target = $region64
        $region63: #{aux_up_block_pallas.3} parent=59 // pred_region
          %s437 = sand.u32 %s137, 1
          %s438 = scalar_lea.sflag [#allocation4], %s437
          %s439 = sand.u32 %s137, 1
          %s440 = smul.addr %s439, 32
          %s441 = scalar_lea.vmem [#allocation10], %s440
          %442 = dma.done %s438, 512
        $region64: #{aux_up_block_pallas.3} parent=59 // pred_fallthru
          _
      $region60: #{aux_up_block_pallas.3} parent=5 // pred_fallthru
        _
    $region6: #{aux_up_block_pallas.3} parent=1 // loop_footer
      %s22 = sadd.s32 1, %s18
    $region7: #{aux_up_block_pallas.3} parent=1 // loop_footer_branch
      %17 = sbr.rel target = $region3
    $region8: #{aux_up_block_pallas.3} parent=1 // loop_exit
      _
    %443 = vsyncpa [#allocation3], 1
    %s444 = scalar_lea.sflag [#allocation3], 1
    %445 = vsyncpa %s444, 1
    %446 = vsyncpa [#allocation6], 1
    %447 = vsyncpa [#allocation9], 1
    %448 = vsyncpa [#allocation4], 1
    %s449 = scalar_lea.sflag [#allocation4], 1
    %450 = vsyncpa %s449, 1

</llo_original>
